<compile_context>
chip_gen: v5e
topology: v5e:2x2
jax: 0.10.0
libtpu: 0.0.40
codegen_flags: <defaults>
</compile_context>

<pallas_src>
import math

import jax
import jax.numpy as jnp
from jax.experimental import pallas as pl
from jax.experimental.pallas import tpu as pltpu


def _round_up(n, m):
    return ((n + m - 1) // m) * m


def fcnn8_kernel(x_ref, w_ref, b_ref, o_ref):
    """One batch tile of the full forward pass.

    x_ref: (TM, 8)        float32 input rows
    w_ref: (4, 128, 128)  compute dtype (bf16 or f32); [0, :8, :] = folded W0@W1
    b_ref: (8, 128)       f32; rows 0..2 = padded biases, row 3 = b4 in every lane
    o_ref: (G, 128)       f32, G = TM//128; o[g, j] = sigmoid(tile row g*128 + j)
    """
    cdt = w_ref.dtype
    x = x_ref[...].astype(cdt)                       # in-kernel f32 -> bf16 cast

    # folded (Linear(8->128) ∘ Linear(128->64)) + ReLU  (padded to 128 lanes)
    h = jnp.dot(x, w_ref[0, :8, :], preferred_element_type=jnp.float32)
    h = jnp.maximum(h + b_ref[0:1, :], 0.0)

    # Linear(64->32) + ReLU   (K sliced to the real width 64)
    h = jnp.dot(h[:, :64].astype(cdt), w_ref[1, :64, :],
                preferred_element_type=jnp.float32)
    h = jnp.maximum(h + b_ref[1:2, :], 0.0)

    # Linear(32->16) + ReLU   (K = 32)
    h = jnp.dot(h[:, :32].astype(cdt), w_ref[2, :32, :],
                preferred_element_type=jnp.float32)
    h = jnp.maximum(h + b_ref[2:3, :], 0.0)

    # Linear(16->1)           (K = 16); only column 0 of the result matters.
    h = jnp.dot(h[:, :16].astype(cdt), w_ref[3, :16, :],
                preferred_element_type=jnp.float32)

    # Pack column 0 of each 128-row group into one lane-dense output row
    # (sublane -> lane relayout via a square XLU transpose), then do the
    # bias-add + sigmoid on the packed row only (128x less VPU/EUP work).
    groups = o_ref.shape[0]
    b4 = b_ref[3:4, :]                               # b4 replicated in all lanes
    for g in range(groups):
        row = jnp.transpose(h[g * 128:(g + 1) * 128, :])[0:1, :] + b4
        o_ref[g:g + 1, :] = (0.5 * (jnp.tanh(0.5 * row) + 1.0)).astype(o_ref.dtype)


def prepare_packed_params(params, compute_dtype=jnp.bfloat16):
    """Fold layer0 into layer1, zero-pad everything to 128 lanes, pack slabs.

    params: list of 5 (W (in,out), b (1,out)) f32 pairs (PyTorch layout, transposed).
    Returns (w_slab (4,128,128) compute_dtype, b_slab (8,128) f32).
    """
    (w0, b0), (w1, b1), (w2, b2), (w3, b3), (w4, b4) = params

    # Fold: (x@W0 + b0)@W1 + b1 == x@(W0@W1) + (b0@W1 + b1)   (done once, in f32)
    w01 = w0 @ w1                   # (8, 64)
    b01 = b0 @ w1 + b1              # (1, 64)

    def pad_w(w):
        out = jnp.zeros((128, 128), jnp.float32)
        return out.at[: w.shape[0], : w.shape[1]].set(w)

    w_slab = jnp.stack([pad_w(w01), pad_w(w2), pad_w(w3), pad_w(w4)])
    w_slab = w_slab.astype(compute_dtype)

    b_slab = jnp.zeros((8, 128), jnp.float32)
    b_slab = b_slab.at[0, : b01.shape[1]].set(b01[0])
    b_slab = b_slab.at[1, : b2.shape[1]].set(b2[0])
    b_slab = b_slab.at[2, : b3.shape[1]].set(b3[0])
    # Final bias is added AFTER packing (batch rows live in lanes there), so
    # replicate it across all 128 lanes.
    b_slab = b_slab.at[3, :].set(b4[0, 0])
    return w_slab, b_slab


def fcnn8_forward(x, w_slab, b_slab, *, block_rows=1024):
    """x: (B, 8) float32. Returns (B, 1) float32 sigmoid outputs."""
    B = x.shape[0]

    # Batch tile: multiple of 128 (output packing / bf16 row packing), capped
    # so the grid keeps >= 2 steps when B allows it (v7x dual-TC sharding).
    block_rows = max(128, _round_up(block_rows, 128))
    half = _round_up(pl.cdiv(B, 2), 128)
    tm = max(128, min(block_rows, half))
    num_tiles = pl.cdiv(B, tm)
    groups = tm // 128

    out = pl.pallas_call(
        fcnn8_kernel,
        out_shape=jax.ShapeDtypeStruct((num_tiles, groups, 128), jnp.float32),
        grid=(num_tiles,),
        in_specs=[
            pl.BlockSpec((tm, 8), lambda i: (i, 0)),            # x: tiled rows (f32)
            pl.BlockSpec((4, 128, 128), lambda i: (0, 0, 0)),   # weights: resident
            pl.BlockSpec((8, 128), lambda i: (0, 0)),           # biases: resident
        ],
        # packed, lane-dense output: one (groups, 128) slab per grid step
        out_specs=pl.BlockSpec((None, groups, 128), lambda i: (i, 0, 0)),
        compiler_params=pltpu.CompilerParams(
            dimension_semantics=("parallel",),                  # 2x on v7x dual-TC
        ),
    )(x, w_slab, b_slab)

    # out[i, g, j] == sigmoid(batch row i*tm + g*128 + j); flatten & trim padding.
    return out.reshape(-1)[:B].reshape(B, 1)


def init_params(key):
    """Deterministic init mimicking torch.nn.Linear default: U(-1/sqrt(in), 1/sqrt(in))."""
    dims = [8, 128, 64, 32, 16, 1]
    params = []
    for i in range(len(dims) - 1):
        fan_in, fan_out = dims[i], dims[i + 1]
        key, kw, kb = jax.random.split(key, 3)
        bound = 1.0 / math.sqrt(fan_in)
        w = jax.random.uniform(kw, (fan_in, fan_out), jnp.float32, -bound, bound)
        b = jax.random.uniform(kb, (1, fan_out), jnp.float32, -bound, bound)
        params.append((w, b))
    return params


def reference_forward(x, params):
    h = x @ params[0][0] + params[0][1]
    h = jnp.maximum(h @ params[1][0] + params[1][1], 0.0)
    h = jnp.maximum(h @ params[2][0] + params[2][1], 0.0)
    h = jnp.maximum(h @ params[3][0] + params[3][1], 0.0)
    return jax.nn.sigmoid(h @ params[4][0] + params[4][1])


if __name__ == "__main__":
    key = jax.random.PRNGKey(0)
    key, kx = jax.random.split(key)
    params = init_params(key)

    # --- small batch, f32 slab: strict correctness check vs reference ---
    B = 8
    x = jax.random.normal(kx, (B, 8), jnp.float32)
    w32, b32 = prepare_packed_params(params, compute_dtype=jnp.float32)
    out = jax.block_until_ready(fcnn8_forward(x, w32, b32))
    ref = reference_forward(x, params)
    assert out.shape == (B, 1)
    assert jnp.allclose(out, ref, atol=2e-5, rtol=2e-5)

    # --- larger batch, bf16 MXU operands: exercises multi-tile grid + packing ---
    key, kx2 = jax.random.split(key)
    B2 = 1024
    x2 = jax.random.normal(kx2, (B2, 8), jnp.float32)
    wbf, bbf = prepare_packed_params(params, compute_dtype=jnp.bfloat16)
    out2 = jax.block_until_ready(fcnn8_forward(x2, wbf, bbf))   # tm=512, 2 grid steps
    ref2 = reference_forward(x2, params)
    assert out2.shape == (B2, 1)
    assert float(jnp.max(jnp.abs(out2 - ref2))) < 3e-2

    print("KERNEL_OK")
</pallas_src>

<mosaic_0001>
module attributes {stable_mosaic.version = 11 : i64} {
  func.func @fcnn8_kernel(%arg0: i32, %arg1: memref<128x8xf32, #tpu.memory_space<vmem>>, %arg2: memref<4x128x128xf32, #tpu.memory_space<vmem>>, %arg3: memref<8x128xf32, #tpu.memory_space<vmem>>, %arg4: memref<1x1x128xf32, #tpu.memory_space<vmem>>) attributes {dimension_semantics = [#tpu.dimension_semantics<parallel>], iteration_bounds = array<i64: 1>, scalar_prefetch = 0 : i64, scratch_operands = 0 : i64, tpu.core_type = #tpu.core_type<tc>, window_params = [{transform_indices = @transform_0, window_bounds = array<i64: 128, 8>}, {pipeline_mode = #tpu.pipeline_mode<synchronous>, transform_indices = @transform_1, window_bounds = array<i64: 4, 128, 128>}, {pipeline_mode = #tpu.pipeline_mode<synchronous>, transform_indices = @transform_2, window_bounds = array<i64: 8, 128>}, {transform_indices = @transform_3, window_bounds = array<i64: 1, 1, 128>}]} {
    %c0 = arith.constant 0 : index
    %c0_0 = arith.constant 0 : index
    %0 = vector.load %arg1[%c0, %c0_0] : memref<128x8xf32, #tpu.memory_space<vmem>>, vector<128x8xf32>
    %c0_1 = arith.constant 0 : index
    %c0_2 = arith.constant 0 : index
    %c0_3 = arith.constant 0 : index
    %1 = vector.load %arg2[%c0_1, %c0_2, %c0_3] : memref<4x128x128xf32, #tpu.memory_space<vmem>>, vector<1x8x128xf32>
    %2 = vector.shape_cast %1 : vector<1x8x128xf32> to vector<8x128xf32>
    %cst = arith.constant dense<0.000000e+00> : vector<128x128xf32>
    %3 = tpu.matmul %0, %2, %cst {dimension_numbers = #tpu.dot_dimension_numbers<[1], [0], [0], [1], [0, 0, 1, 1], [], []>} : vector<128x8xf32>, vector<8x128xf32>, vector<128x128xf32> -> vector<128x128xf32>
    %c0_4 = arith.constant 0 : index
    %c0_5 = arith.constant 0 : index
    %4 = vector.load %arg3[%c0_4, %c0_5] : memref<8x128xf32, #tpu.memory_space<vmem>>, vector<1x128xf32>
    %5 = vector.broadcast %4 : vector<1x128xf32> to vector<128x128xf32>
    %6 = arith.addf %3, %5 : vector<128x128xf32>
    %cst_6 = arith.constant 0.000000e+00 : f32
    %7 = vector.broadcast %cst_6 : f32 to vector<128x128xf32>
    %8 = arith.maximumf %6, %7 : vector<128x128xf32>
    %9 = vector.extract_strided_slice %8 {offsets = [0, 0], sizes = [128, 64], strides = [1, 1]} : vector<128x128xf32> to vector<128x64xf32>
    %c1 = arith.constant 1 : index
    %c0_7 = arith.constant 0 : index
    %c0_8 = arith.constant 0 : index
    %10 = vector.load %arg2[%c1, %c0_7, %c0_8] : memref<4x128x128xf32, #tpu.memory_space<vmem>>, vector<1x64x128xf32>
    %11 = vector.shape_cast %10 : vector<1x64x128xf32> to vector<64x128xf32>
    %cst_9 = arith.constant dense<0.000000e+00> : vector<128x128xf32>
    %12 = tpu.matmul %9, %11, %cst_9 {dimension_numbers = #tpu.dot_dimension_numbers<[1], [0], [0], [1], [0, 0, 1, 1], [], []>} : vector<128x64xf32>, vector<64x128xf32>, vector<128x128xf32> -> vector<128x128xf32>
    %c1_10 = arith.constant 1 : index
    %c0_11 = arith.constant 0 : index
    %13 = vector.load %arg3[%c1_10, %c0_11] : memref<8x128xf32, #tpu.memory_space<vmem>>, vector<1x128xf32>
    %14 = vector.broadcast %13 : vector<1x128xf32> to vector<128x128xf32>
    %15 = arith.addf %12, %14 : vector<128x128xf32>
    %cst_12 = arith.constant 0.000000e+00 : f32
    %16 = vector.broadcast %cst_12 : f32 to vector<128x128xf32>
    %17 = arith.maximumf %15, %16 : vector<128x128xf32>
    %18 = vector.extract_strided_slice %17 {offsets = [0, 0], sizes = [128, 32], strides = [1, 1]} : vector<128x128xf32> to vector<128x32xf32>
    %c2 = arith.constant 2 : index
    %c0_13 = arith.constant 0 : index
    %c0_14 = arith.constant 0 : index
    %19 = vector.load %arg2[%c2, %c0_13, %c0_14] : memref<4x128x128xf32, #tpu.memory_space<vmem>>, vector<1x32x128xf32>
    %20 = vector.shape_cast %19 : vector<1x32x128xf32> to vector<32x128xf32>
    %cst_15 = arith.constant dense<0.000000e+00> : vector<128x128xf32>
    %21 = tpu.matmul %18, %20, %cst_15 {dimension_numbers = #tpu.dot_dimension_numbers<[1], [0], [0], [1], [0, 0, 1, 1], [], []>} : vector<128x32xf32>, vector<32x128xf32>, vector<128x128xf32> -> vector<128x128xf32>
    %c2_16 = arith.constant 2 : index
    %c0_17 = arith.constant 0 : index
    %22 = vector.load %arg3[%c2_16, %c0_17] : memref<8x128xf32, #tpu.memory_space<vmem>>, vector<1x128xf32>
    %23 = vector.broadcast %22 : vector<1x128xf32> to vector<128x128xf32>
    %24 = arith.addf %21, %23 : vector<128x128xf32>
    %cst_18 = arith.constant 0.000000e+00 : f32
    %25 = vector.broadcast %cst_18 : f32 to vector<128x128xf32>
    %26 = arith.maximumf %24, %25 : vector<128x128xf32>
    %27 = vector.extract_strided_slice %26 {offsets = [0, 0], sizes = [128, 16], strides = [1, 1]} : vector<128x128xf32> to vector<128x16xf32>
    %c3 = arith.constant 3 : index
    %c0_19 = arith.constant 0 : index
    %c0_20 = arith.constant 0 : index
    %28 = vector.load %arg2[%c3, %c0_19, %c0_20] : memref<4x128x128xf32, #tpu.memory_space<vmem>>, vector<1x16x128xf32>
    %29 = vector.shape_cast %28 : vector<1x16x128xf32> to vector<16x128xf32>
    %cst_21 = arith.constant dense<0.000000e+00> : vector<128x128xf32>
    %30 = tpu.matmul %27, %29, %cst_21 {dimension_numbers = #tpu.dot_dimension_numbers<[1], [0], [0], [1], [0, 0, 1, 1], [], []>} : vector<128x16xf32>, vector<16x128xf32>, vector<128x128xf32> -> vector<128x128xf32>
    %c3_22 = arith.constant 3 : index
    %c0_23 = arith.constant 0 : index
    %31 = vector.load %arg3[%c3_22, %c0_23] : memref<8x128xf32, #tpu.memory_space<vmem>>, vector<1x128xf32>
    %32 = tpu.transpose %30, [1, 0] : vector<128x128xf32> -> vector<128x128xf32>
    %33 = vector.extract_strided_slice %32 {offsets = [0, 0], sizes = [1, 128], strides = [1, 1]} : vector<128x128xf32> to vector<1x128xf32>
    %34 = arith.addf %33, %31 : vector<1x128xf32>
    %cst_24 = arith.constant 5.000000e-01 : f32
    %35 = vector.broadcast %cst_24 : f32 to vector<1x128xf32>
    %36 = arith.mulf %35, %34 : vector<1x128xf32>
    %37 = math.tanh %36 : vector<1x128xf32>
    %cst_25 = arith.constant 1.000000e+00 : f32
    %38 = vector.broadcast %cst_25 : f32 to vector<1x128xf32>
    %39 = arith.addf %37, %38 : vector<1x128xf32>
    %cst_26 = arith.constant 5.000000e-01 : f32
    %40 = vector.broadcast %cst_26 : f32 to vector<1x128xf32>
    %41 = arith.mulf %40, %39 : vector<1x128xf32>
    %c0_27 = arith.constant 0 : index
    %c0_28 = arith.constant 0 : index
    %c0_29 = arith.constant 0 : index
    %42 = vector.load %arg4[%c0_27, %c0_28, %c0_29] : memref<1x1x128xf32, #tpu.memory_space<vmem>>, vector<1x1x128xf32>
    %43 = vector.shape_cast %42 : vector<1x1x128xf32> to vector<1x128xf32>
    %44 = vector.shape_cast %41 : vector<1x128xf32> to vector<1x1x128xf32>
    tpu.vector_store %arg4[%c0_27, %c0_28, %c0_29], %44 {strides = array<i32>} : memref<1x1x128xf32, #tpu.memory_space<vmem>>, vector<1x1x128xf32>,
    return
  }
  func.func @transform_0(%arg0: i32) -> (i32, i32) {
    %c0_i32 = arith.constant 0 : i32
    %c0_i32_0 = arith.constant 0 : i32
    return %arg0, %c0_i32 : i32, i32
  }
  func.func @transform_1(%arg0: i32) -> (i32, i32, i32) {
    %c0_i32 = arith.constant 0 : i32
    %c0_i32_0 = arith.constant 0 : i32
    %c0_i32_1 = arith.constant 0 : i32
    %c0_i32_2 = arith.constant 0 : i32
    return %c0_i32, %c0_i32_0, %c0_i32_1 : i32, i32, i32
  }
  func.func @transform_2(%arg0: i32) -> (i32, i32) {
    %c0_i32 = arith.constant 0 : i32
    %c0_i32_0 = arith.constant 0 : i32
    %c0_i32_1 = arith.constant 0 : i32
    return %c0_i32, %c0_i32_0 : i32, i32
  }
  func.func @transform_3(%arg0: i32) -> (i32, i32, i32) {
    %c0_i32 = arith.constant 0 : i32
    %c0_i32_0 = arith.constant 0 : i32
    %c0_i32_1 = arith.constant 0 : i32
    return %arg0, %c0_i32, %c0_i32_0 : i32, i32, i32
  }
}

</mosaic_0001>

<llo_original>
// kernel: tpu_custom_call.1
$region0: #{tpu_custom_call.1}
  #allocation0 [shape = 'u32[]', space=smem, size = 0x4, offset = 0x4, fixed_abs, tag = 'smem constant byte address 0x4 - core index']
  #allocation1 [shape = 'u32[72,128]{1,0:T(1,128)}', space=vmem, size = 0x9000, scoped, tag = 'internal scratch']
  %s0 = inlined_call_operand.hbm [shape: f32[8,8], index: 0, kind: input, shape index: {}]
  %s1 = inlined_call_operand.hbm [shape: f32[4,128,128], index: 1, kind: input, shape index: {}]
  %s2 = inlined_call_operand.hbm [shape: f32[8,128], index: 2, kind: input, shape index: {}]
  %s3 = inlined_call_operand.hbm [shape: f32[1,1,128], index: 3, kind: output, shape index: {}]
  %s4 = sld [smem:[#allocation0]]
  $region34: #{tpu_custom_call.1} parent=0
    _
  %s6 = ssub.s32 1, %s4
  %s7 = scalar_select 0, %s6, %s4
  $region1: #{tpu_custom_call.1} parent=0
    #allocation2 [shape = 'u8[65536]{0}', space=vmem, size = 0x10000, scoped, tag = 'input window, operand 0, single buffered']
    #allocation3 [shape = 's32[1]{0}', space=sflag, size = 0x4, scoped, tag = 'scoped memory for tpu_custom_call.1']
    #allocation4 [shape = 's32[1]{0}', space=sflag, size = 0x4, scoped, tag = 'scoped memory for tpu_custom_call.1']
    #allocation5 [shape = 'u8[262144]{0}', space=vmem, size = 0x40000, scoped, tag = 'input window, operand 1, single buffered']
    #allocation6 [shape = 's32[1]{0}', space=sflag, size = 0x4, scoped, tag = 'scoped memory for tpu_custom_call.1']
    #allocation7 [shape = 'u8[4096]{0}', space=vmem, size = 0x1000, scoped, tag = 'input window, operand 2, single buffered']
    #allocation8 [shape = 'u8[512]{0}', space=vmem, size = 0x400, scoped, tag = 'output window, operand 0, single buffered']
    %8 = vsyncpa [#allocation3], 0
    %9 = vsyncpa [#allocation6], 0
    %10 = vsyncpa [#allocation4], 0
    // Predicated region
    $region2: #{tpu_custom_call.1} parent=1 // pred_check
      _
    $region3: #{tpu_custom_call.1} parent=1 // pred_check_branch
      %12 = sbr.rel (0) target = $region5
    $region4: #{tpu_custom_call.1} parent=1 // pred_region
      %14 = vsyncadd [#allocation3], 1920
      %s15 = sshll.u32 %s0, 4
      %s16 = int_to_ptr.hbm [resolvable:$true] %s15
      %s17 = sshll.u32 [#allocation2], 4
      %s18 = int_to_ptr.vmem [resolvable:$true] %s17
      %23 = dma.hbm_to_vmem [thread:$0]  %s16, 128, %s18, [#allocation3], 128, 128, 8
    $region5: #{tpu_custom_call.1} parent=1 // pred_fallthru
      _
    // Predicated region
    $region6: #{tpu_custom_call.1} parent=1 // pred_check
      _
    $region7: #{tpu_custom_call.1} parent=1 // pred_check_branch
      %25 = sbr.rel (0) target = $region9
    $region8: #{tpu_custom_call.1} parent=1 // pred_region
      %27 = vsyncadd [#allocation6], 0
      %s28 = sshll.u32 %s1, 4
      %s29 = int_to_ptr.hbm [resolvable:$true] %s28
      %s30 = sshll.u32 [#allocation5], 4
      %s31 = int_to_ptr.vmem [resolvable:$true] %s30
      %36 = dma.hbm_to_vmem [thread:$0]  %s29, 8192, %s31, [#allocation6], 128, 128, 8
    $region9: #{tpu_custom_call.1} parent=1 // pred_fallthru
      _
    // Predicated region
    $region10: #{tpu_custom_call.1} parent=1 // pred_check
      _
    $region11: #{tpu_custom_call.1} parent=1 // pred_check_branch
      %38 = sbr.rel (0) target = $region13
    $region12: #{tpu_custom_call.1} parent=1 // pred_region
      %40 = vsyncadd [#allocation6], 0
      %s42 = sshll.u32 %s2, 4
      %s43 = int_to_ptr.hbm [resolvable:$true] %s42
      %s44 = sshll.u32 [#allocation7], 4
      %s45 = int_to_ptr.vmem [resolvable:$true] %s44
      %47 = dma.hbm_to_vmem [thread:$0]  %s43, 128, %s45, [#allocation6]
    $region13: #{tpu_custom_call.1} parent=1 // pred_fallthru
      _
    // Predicated region
    $region14: #{tpu_custom_call.1} parent=1 // pred_check
      _
    $region15: #{tpu_custom_call.1} parent=1 // pred_check_branch
      %49 = sbr.rel (0) target = $region17
    $region16: #{tpu_custom_call.1} parent=1 // pred_region
      %51 = dma.done [#allocation3], 2048
    $region17: #{tpu_custom_call.1} parent=1 // pred_fallthru
      _
    // Predicated region
    $region18: #{tpu_custom_call.1} parent=1 // pred_check
      _
    $region19: #{tpu_custom_call.1} parent=1 // pred_check_branch
      %53 = sbr.rel (0) target = $region21
    $region20: #{tpu_custom_call.1} parent=1 // pred_region
      %55 = dma.done [#allocation6], 8192
    $region21: #{tpu_custom_call.1} parent=1 // pred_fallthru
      _
    // Predicated region
    $region22: #{tpu_custom_call.1} parent=1 // pred_check
      _
    $region23: #{tpu_custom_call.1} parent=1 // pred_check_branch
      %57 = sbr.rel (0) target = $region25
    $region24: #{tpu_custom_call.1} parent=1 // pred_region
      %59 = dma.done [#allocation6], 128
    $region25: #{tpu_custom_call.1} parent=1 // pred_fallthru
      _
    %v60 = vld [vmem:[#allocation2] sm:$0xff]
    %v61 = vld [vmem:[#allocation2 + $0x8] sm:$0xff]
    %v62 = vld [vmem:[#allocation2 + $0x10] sm:$0xff]
    %v63 = vld [vmem:[#allocation2 + $0x18] sm:$0xff]
    %v64 = vld [vmem:[#allocation2 + $0x20] sm:$0xff]
    %v65 = vld [vmem:[#allocation2 + $0x28] sm:$0xff]
    %v66 = vld [vmem:[#allocation2 + $0x30] sm:$0xff]
    %v67 = vld [vmem:[#allocation2 + $0x38] sm:$0xff]
    %v68 = vld [vmem:[#allocation2 + $0x40] sm:$0xff]
    %v69 = vld [vmem:[#allocation2 + $0x48] sm:$0xff]
    %v70 = vld [vmem:[#allocation2 + $0x50] sm:$0xff]
    %v71 = vld [vmem:[#allocation2 + $0x58] sm:$0xff]
    %v72 = vld [vmem:[#allocation2 + $0x60] sm:$0xff]
    %v73 = vld [vmem:[#allocation2 + $0x68] sm:$0xff]
    %v74 = vld [vmem:[#allocation2 + $0x70] sm:$0xff]
    %v75 = vld [vmem:[#allocation2 + $0x78] sm:$0xff]
    %v76 = vld [vmem:[#allocation5] sm:$0xff]
    %v77 = vld [vmem:[#allocation7] sm:$0x1]
    %v78 = vperm.slane %v77, 0
    %vm79 = vcmask 64512
    %v81 = vsel %vm79, %v60, 0
    %v84 = vsel %vm79, %v61, 0
    %v87 = vsel %vm79, %v62, 0
    %v90 = vsel %vm79, %v63, 0
    %v93 = vsel %vm79, %v64, 0
    %v96 = vsel %vm79, %v65, 0
    %v99 = vsel %vm79, %v66, 0
    %v102 = vsel %vm79, %v67, 0
    %v105 = vsel %vm79, %v68, 0
    %v108 = vsel %vm79, %v69, 0
    %v111 = vsel %vm79, %v70, 0
    %v114 = vsel %vm79, %v71, 0
    %v117 = vsel %vm79, %v72, 0
    %v120 = vsel %vm79, %v73, 0
    %v123 = vsel %vm79, %v74, 0
    %v126 = vsel %vm79, %v75, 0
    %128 = vmatpush.msra.mxu0 0.0
    %129 = vmatpush.msra.mxu0 0.0
    %130 = vmatpush.msra.mxu0 0.0
    %131 = vmatpush.msra.mxu0 0.0
    %132 = vmatpush.msra.mxu0 0.0
    %133 = vmatpush.msra.mxu0 0.0
    %134 = vmatpush.msra.mxu0 0.0
    %135 = vmatpush.msra.mxu0 0.0
    %136 = vmatpush.msra.mxu0 0.0
    %137 = vmatpush.msra.mxu0 0.0
    %138 = vmatpush.msra.mxu0 0.0
    %139 = vmatpush.msra.mxu0 0.0
    %140 = vmatpush.msra.mxu0 0.0
    %141 = vmatpush.msra.mxu0 0.0
    %142 = vmatpush.msra.mxu0 0.0
    %143 = vmatpush.msra.mxu0 %v76
    %144 = vmatmul.f32.gmra.mxu0 %v81
    %v145 = vpop.f32.mrf.mxu0
    %v146 = vadd.f32 %v78, %v145
    %147 = vmatmul.f32.gmra.mxu0 %v84
    %v148 = vpop.f32.mrf.mxu0
    %v149 = vadd.f32 %v78, %v148
    %150 = vmatmul.f32.gmra.mxu0 %v87
    %v151 = vpop.f32.mrf.mxu0
    %v152 = vadd.f32 %v78, %v151
    %153 = vmatmul.f32.gmra.mxu0 %v90
    %v154 = vpop.f32.mrf.mxu0
    %v155 = vadd.f32 %v78, %v154
    %156 = vmatmul.f32.gmra.mxu0 %v93
    %v157 = vpop.f32.mrf.mxu0
    %v158 = vadd.f32 %v78, %v157
    %159 = vmatmul.f32.gmra.mxu0 %v96
    %v160 = vpop.f32.mrf.mxu0
    %v161 = vadd.f32 %v78, %v160
    %162 = vmatmul.f32.gmra.mxu0 %v99
    %v163 = vpop.f32.mrf.mxu0
    %v164 = vadd.f32 %v78, %v163
    %165 = vmatmul.f32.gmra.mxu0 %v102
    %v166 = vpop.f32.mrf.mxu0
    %v167 = vadd.f32 %v78, %v166
    %168 = vmatmul.f32.gmra.mxu0 %v105
    %v169 = vpop.f32.mrf.mxu0
    %v170 = vadd.f32 %v78, %v169
    %171 = vmatmul.f32.gmra.mxu0 %v108
    %v172 = vpop.f32.mrf.mxu0
    %v173 = vadd.f32 %v78, %v172
    %174 = vmatmul.f32.gmra.mxu0 %v111
    %v175 = vpop.f32.mrf.mxu0
    %v176 = vadd.f32 %v78, %v175
    %177 = vmatmul.f32.gmra.mxu0 %v114
    %v178 = vpop.f32.mrf.mxu0
    %v179 = vadd.f32 %v78, %v178
    %180 = vmatmul.f32.gmra.mxu0 %v117
    %v181 = vpop.f32.mrf.mxu0
    %v182 = vadd.f32 %v78, %v181
    %183 = vmatmul.f32.gmra.mxu0 %v120
    %v184 = vpop.f32.mrf.mxu0
    %v185 = vadd.f32 %v78, %v184
    %186 = vmatmul.f32.gmra.mxu0 %v123
    %v187 = vpop.f32.mrf.mxu0
    %v188 = vadd.f32 %v78, %v187
    %189 = vmatmul.f32.gmra.mxu0 %v126
    %v190 = vpop.f32.mrf.mxu0
    %v191 = vadd.f32 %v78, %v190
    %192 = vdwg.mxu0
    %v193 = vmax.f32 %v146, 0.0
    %v194 = vmax.f32 %v149, 0.0
    %v195 = vmax.f32 %v152, 0.0
    %v196 = vmax.f32 %v155, 0.0
    %v197 = vmax.f32 %v158, 0.0
    %v198 = vmax.f32 %v161, 0.0
    %v199 = vmax.f32 %v164, 0.0
    %v200 = vmax.f32 %v167, 0.0
    %v201 = vmax.f32 %v170, 0.0
    %v202 = vmax.f32 %v173, 0.0
    %v203 = vmax.f32 %v176, 0.0
    %v204 = vmax.f32 %v179, 0.0
    %v205 = vmax.f32 %v182, 0.0
    %v206 = vmax.f32 %v185, 0.0
    %v207 = vmax.f32 %v188, 0.0
    %v208 = vmax.f32 %v191, 0.0
    %s209 = scalar_lea.vmem [#allocation5], 128
    %v210 = vld [vmem:[%s209] sm:$0xff]
    %v211 = vld [vmem:[%s209 + $0x8] sm:$0xff]
    %v212 = vld [vmem:[%s209 + $0x10] sm:$0xff]
    %v213 = vld [vmem:[%s209 + $0x18] sm:$0xff]
    %v214 = vld [vmem:[%s209 + $0x20] sm:$0xff]
    %v215 = vld [vmem:[%s209 + $0x28] sm:$0xff]
    %v216 = vld [vmem:[%s209 + $0x30] sm:$0xff]
    %v217 = vld [vmem:[%s209 + $0x38] sm:$0xff]
    %v218 = vld [vmem:[#allocation7 + $0x1] sm:$0x1]
    %v219 = vperm.slane %v218, 0
    %vm220 = vcmask 523264
    %v222 = vsel %vm220, %v193, 0
    %v225 = vsel %vm220, %v194, 0
    %v228 = vsel %vm220, %v195, 0
    %v231 = vsel %vm220, %v196, 0
    %v234 = vsel %vm220, %v197, 0
    %v237 = vsel %vm220, %v198, 0
    %v240 = vsel %vm220, %v199, 0
    %v243 = vsel %vm220, %v200, 0
    %v246 = vsel %vm220, %v201, 0
    %v249 = vsel %vm220, %v202, 0
    %v252 = vsel %vm220, %v203, 0
    %v255 = vsel %vm220, %v204, 0
    %v258 = vsel %vm220, %v205, 0
    %v261 = vsel %vm220, %v206, 0
    %v264 = vsel %vm220, %v207, 0
    %v267 = vsel %vm220, %v208, 0
    %269 = vmatpush.msra.mxu0 0.0
    %270 = vmatpush.msra.mxu0 0.0
    %271 = vmatpush.msra.mxu0 0.0
    %272 = vmatpush.msra.mxu0 0.0
    %273 = vmatpush.msra.mxu0 0.0
    %274 = vmatpush.msra.mxu0 0.0
    %275 = vmatpush.msra.mxu0 0.0
    %276 = vmatpush.msra.mxu0 0.0
    %277 = vmatpush.msra.mxu0 %v217
    %278 = vmatpush.msra.mxu0 %v216
    %279 = vmatpush.msra.mxu0 %v215
    %280 = vmatpush.msra.mxu0 %v214
    %281 = vmatpush.msra.mxu0 %v213
    %282 = vmatpush.msra.mxu0 %v212
    %283 = vmatpush.msra.mxu0 %v211
    %284 = vmatpush.msra.mxu0 %v210
    %285 = vmatmul.f32.gmra.mxu0 %v222
    %v286 = vpop.f32.mrf.mxu0
    %v287 = vadd.f32 %v219, %v286
    %288 = vmatmul.f32.gmra.mxu0 %v225
    %v289 = vpop.f32.mrf.mxu0
    %v290 = vadd.f32 %v219, %v289
    %291 = vmatmul.f32.gmra.mxu0 %v228
    %v292 = vpop.f32.mrf.mxu0
    %v293 = vadd.f32 %v219, %v292
    %294 = vmatmul.f32.gmra.mxu0 %v231
    %v295 = vpop.f32.mrf.mxu0
    %v296 = vadd.f32 %v219, %v295
    %297 = vmatmul.f32.gmra.mxu0 %v234
    %v298 = vpop.f32.mrf.mxu0
    %v299 = vadd.f32 %v219, %v298
    %300 = vmatmul.f32.gmra.mxu0 %v237
    %v301 = vpop.f32.mrf.mxu0
    %v302 = vadd.f32 %v219, %v301
    %303 = vmatmul.f32.gmra.mxu0 %v240
    %v304 = vpop.f32.mrf.mxu0
    %v305 = vadd.f32 %v219, %v304
    %306 = vmatmul.f32.gmra.mxu0 %v243
    %v307 = vpop.f32.mrf.mxu0
    %v308 = vadd.f32 %v219, %v307
    %309 = vmatmul.f32.gmra.mxu0 %v246
    %v310 = vpop.f32.mrf.mxu0
    %v311 = vadd.f32 %v219, %v310
    %312 = vmatmul.f32.gmra.mxu0 %v249
    %v313 = vpop.f32.mrf.mxu0
    %v314 = vadd.f32 %v219, %v313
    %315 = vmatmul.f32.gmra.mxu0 %v252
    %v316 = vpop.f32.mrf.mxu0
    %v317 = vadd.f32 %v219, %v316
    %318 = vmatmul.f32.gmra.mxu0 %v255
    %v319 = vpop.f32.mrf.mxu0
    %v320 = vadd.f32 %v219, %v319
    %321 = vmatmul.f32.gmra.mxu0 %v258
    %v322 = vpop.f32.mrf.mxu0
    %v323 = vadd.f32 %v219, %v322
    %324 = vmatmul.f32.gmra.mxu0 %v261
    %v325 = vpop.f32.mrf.mxu0
    %v326 = vadd.f32 %v219, %v325
    %327 = vmatmul.f32.gmra.mxu0 %v264
    %v328 = vpop.f32.mrf.mxu0
    %v329 = vadd.f32 %v219, %v328
    %330 = vmatmul.f32.gmra.mxu0 %v267
    %v331 = vpop.f32.mrf.mxu0
    %v332 = vadd.f32 %v219, %v331
    %333 = vdwg.mxu0
    %v334 = vmax.f32 %v287, 0.0
    %v335 = vmax.f32 %v290, 0.0
    %v336 = vmax.f32 %v293, 0.0
    %v337 = vmax.f32 %v296, 0.0
    %v338 = vmax.f32 %v299, 0.0
    %v339 = vmax.f32 %v302, 0.0
    %v340 = vmax.f32 %v305, 0.0
    %v341 = vmax.f32 %v308, 0.0
    %v342 = vmax.f32 %v311, 0.0
    %v343 = vmax.f32 %v314, 0.0
    %v344 = vmax.f32 %v317, 0.0
    %v345 = vmax.f32 %v320, 0.0
    %v346 = vmax.f32 %v323, 0.0
    %v347 = vmax.f32 %v326, 0.0
    %v348 = vmax.f32 %v329, 0.0
    %v349 = vmax.f32 %v332, 0.0
    %s350 = scalar_lea.vmem [#allocation5], 256
    %v351 = vld [vmem:[%s350] sm:$0xff]
    %v352 = vld [vmem:[%s350 + $0x8] sm:$0xff]
    %v353 = vld [vmem:[%s350 + $0x10] sm:$0xff]
    %v354 = vld [vmem:[%s350 + $0x18] sm:$0xff]
    %v355 = vld [vmem:[#allocation7 + $0x2] sm:$0x1]
    %v356 = vperm.slane %v355, 0
    %vm357 = vcmask 261120
    %v359 = vsel %vm357, %v334, 0
    %v362 = vsel %vm357, %v335, 0
    %v365 = vsel %vm357, %v336, 0
    %v368 = vsel %vm357, %v337, 0
    %v371 = vsel %vm357, %v338, 0
    %v374 = vsel %vm357, %v339, 0
    %v377 = vsel %vm357, %v340, 0
    %v380 = vsel %vm357, %v341, 0
    %v383 = vsel %vm357, %v342, 0
    %v386 = vsel %vm357, %v343, 0
    %v389 = vsel %vm357, %v344, 0
    %v392 = vsel %vm357, %v345, 0
    %v395 = vsel %vm357, %v346, 0
    %v398 = vsel %vm357, %v347, 0
    %v401 = vsel %vm357, %v348, 0
    %v404 = vsel %vm357, %v349, 0
    %406 = vmatpush.msra.mxu0 0.0
    %407 = vmatpush.msra.mxu0 0.0
    %408 = vmatpush.msra.mxu0 0.0
    %409 = vmatpush.msra.mxu0 0.0
    %410 = vmatpush.msra.mxu0 0.0
    %411 = vmatpush.msra.mxu0 0.0
    %412 = vmatpush.msra.mxu0 0.0
    %413 = vmatpush.msra.mxu0 0.0
    %414 = vmatpush.msra.mxu0 0.0
    %415 = vmatpush.msra.mxu0 0.0
    %416 = vmatpush.msra.mxu0 0.0
    %417 = vmatpush.msra.mxu0 0.0
    %418 = vmatpush.msra.mxu0 %v354
    %419 = vmatpush.msra.mxu0 %v353
    %420 = vmatpush.msra.mxu0 %v352
    %421 = vmatpush.msra.mxu0 %v351
    %422 = vmatmul.f32.gmra.mxu0 %v359
    %v423 = vpop.f32.mrf.mxu0
    %v424 = vadd.f32 %v356, %v423
    %425 = vmatmul.f32.gmra.mxu0 %v362
    %v426 = vpop.f32.mrf.mxu0
    %v427 = vadd.f32 %v356, %v426
    %428 = vmatmul.f32.gmra.mxu0 %v365
    %v429 = vpop.f32.mrf.mxu0
    %v430 = vadd.f32 %v356, %v429
    %431 = vmatmul.f32.gmra.mxu0 %v368
    %v432 = vpop.f32.mrf.mxu0
    %v433 = vadd.f32 %v356, %v432
    %434 = vmatmul.f32.gmra.mxu0 %v371
    %v435 = vpop.f32.mrf.mxu0
    %v436 = vadd.f32 %v356, %v435
    %437 = vmatmul.f32.gmra.mxu0 %v374
    %v438 = vpop.f32.mrf.mxu0
    %v439 = vadd.f32 %v356, %v438
    %440 = vmatmul.f32.gmra.mxu0 %v377
    %v441 = vpop.f32.mrf.mxu0
    %v442 = vadd.f32 %v356, %v441
    %443 = vmatmul.f32.gmra.mxu0 %v380
    %v444 = vpop.f32.mrf.mxu0
    %v445 = vadd.f32 %v356, %v444
    %446 = vmatmul.f32.gmra.mxu0 %v383
    %v447 = vpop.f32.mrf.mxu0
    %v448 = vadd.f32 %v356, %v447
    %449 = vmatmul.f32.gmra.mxu0 %v386
    %v450 = vpop.f32.mrf.mxu0
    %v451 = vadd.f32 %v356, %v450
    %452 = vmatmul.f32.gmra.mxu0 %v389
    %v453 = vpop.f32.mrf.mxu0
    %v454 = vadd.f32 %v356, %v453
    %455 = vmatmul.f32.gmra.mxu0 %v392
    %v456 = vpop.f32.mrf.mxu0
    %v457 = vadd.f32 %v356, %v456
    %458 = vmatmul.f32.gmra.mxu0 %v395
    %v459 = vpop.f32.mrf.mxu0
    %v460 = vadd.f32 %v356, %v459
    %461 = vmatmul.f32.gmra.mxu0 %v398
    %v462 = vpop.f32.mrf.mxu0
    %v463 = vadd.f32 %v356, %v462
    %464 = vmatmul.f32.gmra.mxu0 %v401
    %v465 = vpop.f32.mrf.mxu0
    %v466 = vadd.f32 %v356, %v465
    %467 = vmatmul.f32.gmra.mxu0 %v404
    %v468 = vpop.f32.mrf.mxu0
    %v469 = vadd.f32 %v356, %v468
    %470 = vdwg.mxu0
    %v471 = vmax.f32 %v424, 0.0
    %v472 = vmax.f32 %v427, 0.0
    %v473 = vmax.f32 %v430, 0.0
    %v474 = vmax.f32 %v433, 0.0
    %v475 = vmax.f32 %v436, 0.0
    %v476 = vmax.f32 %v439, 0.0
    %v477 = vmax.f32 %v442, 0.0
    %v478 = vmax.f32 %v445, 0.0
    %v479 = vmax.f32 %v448, 0.0
    %v480 = vmax.f32 %v451, 0.0
    %v481 = vmax.f32 %v454, 0.0
    %v482 = vmax.f32 %v457, 0.0
    %v483 = vmax.f32 %v460, 0.0
    %v484 = vmax.f32 %v463, 0.0
    %v485 = vmax.f32 %v466, 0.0
    %v486 = vmax.f32 %v469, 0.0
    %s487 = scalar_lea.vmem [#allocation5], 384
    %v488 = vld [vmem:[%s487] sm:$0xff]
    %v489 = vld [vmem:[%s487 + $0x8] sm:$0xff]
    %vm490 = vcmask 130048
    %v492 = vsel %vm490, %v471, 0
    %v495 = vsel %vm490, %v472, 0
    %v498 = vsel %vm490, %v473, 0
    %v501 = vsel %vm490, %v474, 0
    %v504 = vsel %vm490, %v475, 0
    %v507 = vsel %vm490, %v476, 0
    %v510 = vsel %vm490, %v477, 0
    %v513 = vsel %vm490, %v478, 0
    %v516 = vsel %vm490, %v479, 0
    %v519 = vsel %vm490, %v480, 0
    %v522 = vsel %vm490, %v481, 0
    %v525 = vsel %vm490, %v482, 0
    %v528 = vsel %vm490, %v483, 0
    %v531 = vsel %vm490, %v484, 0
    %v534 = vsel %vm490, %v485, 0
    %v537 = vsel %vm490, %v486, 0
    %539 = vmatpush.msra.mxu0 0.0
    %540 = vmatpush.msra.mxu0 0.0
    %541 = vmatpush.msra.mxu0 0.0
    %542 = vmatpush.msra.mxu0 0.0
    %543 = vmatpush.msra.mxu0 0.0
    %544 = vmatpush.msra.mxu0 0.0
    %545 = vmatpush.msra.mxu0 0.0
    %546 = vmatpush.msra.mxu0 0.0
    %547 = vmatpush.msra.mxu0 0.0
    %548 = vmatpush.msra.mxu0 0.0
    %549 = vmatpush.msra.mxu0 0.0
    %550 = vmatpush.msra.mxu0 0.0
    %551 = vmatpush.msra.mxu0 0.0
    %552 = vmatpush.msra.mxu0 0.0
    %553 = vmatpush.msra.mxu0 %v489
    %554 = vmatpush.msra.mxu0 %v488
    %555 = vmatmul.f32.gmra.mxu0 %v492
    %v556 = vpop.f32.mrf.mxu0
    %v557 = vadd.f32 0.0, %v556
    %558 = vmatmul.f32.gmra.mxu0 %v495
    %v559 = vpop.f32.mrf.mxu0
    %v560 = vadd.f32 0.0, %v559
    %561 = vmatmul.f32.gmra.mxu0 %v498
    %v562 = vpop.f32.mrf.mxu0
    %v563 = vadd.f32 0.0, %v562
    %564 = vmatmul.f32.gmra.mxu0 %v501
    %v565 = vpop.f32.mrf.mxu0
    %v566 = vadd.f32 0.0, %v565
    %567 = vmatmul.f32.gmra.mxu0 %v504
    %v568 = vpop.f32.mrf.mxu0
    %v569 = vadd.f32 0.0, %v568
    %570 = vmatmul.f32.gmra.mxu0 %v507
    %v571 = vpop.f32.mrf.mxu0
    %v572 = vadd.f32 0.0, %v571
    %573 = vmatmul.f32.gmra.mxu0 %v510
    %v574 = vpop.f32.mrf.mxu0
    %v575 = vadd.f32 0.0, %v574
    %576 = vmatmul.f32.gmra.mxu0 %v513
    %v577 = vpop.f32.mrf.mxu0
    %v578 = vadd.f32 0.0, %v577
    %579 = vmatmul.f32.gmra.mxu0 %v516
    %v580 = vpop.f32.mrf.mxu0
    %v581 = vadd.f32 0.0, %v580
    %582 = vmatmul.f32.gmra.mxu0 %v519
    %v583 = vpop.f32.mrf.mxu0
    %v584 = vadd.f32 0.0, %v583
    %585 = vmatmul.f32.gmra.mxu0 %v522
    %v586 = vpop.f32.mrf.mxu0
    %v587 = vadd.f32 0.0, %v586
    %588 = vmatmul.f32.gmra.mxu0 %v525
    %v589 = vpop.f32.mrf.mxu0
    %v590 = vadd.f32 0.0, %v589
    %591 = vmatmul.f32.gmra.mxu0 %v528
    %v592 = vpop.f32.mrf.mxu0
    %v593 = vadd.f32 0.0, %v592
    %594 = vmatmul.f32.gmra.mxu0 %v531
    %v595 = vpop.f32.mrf.mxu0
    %v596 = vadd.f32 0.0, %v595
    %597 = vmatmul.f32.gmra.mxu0 %v534
    %v598 = vpop.f32.mrf.mxu0
    %v599 = vadd.f32 0.0, %v598
    %600 = vmatmul.f32.gmra.mxu0 %v537
    %v601 = vpop.f32.mrf.mxu0
    %v602 = vadd.f32 0.0, %v601
    %603 = vdwg.mxu0
    %v604 = vld [vmem:[#allocation7 + $0x3] sm:$0x1]
    %605 = vxpose.xlu0.b32.start [1/16] %v557, 128
    %606 = vxpose.xlu0.b32.cont [2/16] %v560, 128
    %607 = vxpose.xlu0.b32.cont [3/16] %v563, 128
    %608 = vxpose.xlu0.b32.cont [4/16] %v566, 128
    %609 = vxpose.xlu0.b32.cont [5/16] %v569, 128
    %610 = vxpose.xlu0.b32.cont [6/16] %v572, 128
    %611 = vxpose.xlu0.b32.cont [7/16] %v575, 128
    %612 = vxpose.xlu0.b32.cont [8/16] %v578, 128
    %613 = vxpose.xlu0.b32.cont [9/16] %v581, 128
    %614 = vxpose.xlu0.b32.cont [10/16] %v584, 128
    %615 = vxpose.xlu0.b32.cont [11/16] %v587, 128
    %616 = vxpose.xlu0.b32.cont [12/16] %v590, 128
    %617 = vxpose.xlu0.b32.cont [13/16] %v593, 128
    %618 = vxpose.xlu0.b32.cont [14/16] %v596, 128
    %619 = vxpose.xlu0.b32.cont [15/16] %v599, 128
    %620 = vxpose.xlu0.b32.end [16/16] %v602, 128
    %v621 = vpop.trf.xlu0
    %v622 = vpop.trf.xlu0
    %v623 = vpop.trf.xlu0
    %v624 = vpop.trf.xlu0
    %v625 = vpop.trf.xlu0
    %v626 = vpop.trf.xlu0
    %v627 = vpop.trf.xlu0
    %v628 = vpop.trf.xlu0
    %v629 = vpop.trf.xlu0
    %v630 = vpop.trf.xlu0
    %v631 = vpop.trf.xlu0
    %v632 = vpop.trf.xlu0
    %v633 = vpop.trf.xlu0
    %v634 = vpop.trf.xlu0
    %v635 = vpop.trf.xlu0
    %v636 = vpop.trf.xlu0
    %v637 = vadd.f32 %v621, %v604
    %v638 = vmul.f32 %v637, 0.5
    %v639 = vtanh.pop %v638
    %v640 = vadd.f32 %v639, 1.0
    %v641 = vmul.f32 %v640, 0.5
    %642 = vst [vmem:[#allocation8] sm:$0x1] %v641
    // Predicated region
    $region26: #{tpu_custom_call.1} parent=1 // pred_check
      _
    $region27: #{tpu_custom_call.1} parent=1 // pred_check_branch
      %644 = sbr.rel (0) target = $region29
    $region28: #{tpu_custom_call.1} parent=1 // pred_region
      %646 = vsyncadd [#allocation4], 0
      %s648 = sshll.u32 [#allocation8], 4
      %s649 = int_to_ptr.vmem [resolvable:$true] %s648
      %s650 = sshll.u32 %s3, 4
      %s651 = int_to_ptr.hbm [resolvable:$true] %s650
      %653 = dma.vmem_to_hbm [thread:$0]  %s649, 16, %s651, [#allocation4]
    $region29: #{tpu_custom_call.1} parent=1 // pred_fallthru
      _
    // Predicated region
    $region30: #{tpu_custom_call.1} parent=1 // pred_check
      _
    $region31: #{tpu_custom_call.1} parent=1 // pred_check_branch
      %655 = sbr.rel (0) target = $region33
    $region32: #{tpu_custom_call.1} parent=1 // pred_region
      %657 = dma.done [#allocation4], 16
    $region33: #{tpu_custom_call.1} parent=1 // pred_fallthru
      _
    %658 = vsyncpa [#allocation3], 1
    %659 = vsyncpa [#allocation6], 1
    %660 = vsyncpa [#allocation4], 1

</llo_original>
